<compile_context>
chip_gen: v5e
topology: v5e:2x2
jax: 0.10.0
libtpu: 0.0.40
codegen_flags: <defaults>
</compile_context>

<pallas_src>
import math

import jax
import jax.numpy as jnp
from jax.experimental import pallas as pl
from jax.experimental.pallas import tpu as pltpu


def _add_pe_kernel(x_ref, pe_ref, o_ref):
    # x_ref : [tile_s, batch, d_model]
    # pe_ref: [tile_s, d_model]  (2-D; broadcast over the batch axis in-kernel)
    x = x_ref[...]
    pe = pe_ref[...].astype(x.dtype)
    o_ref[...] = (x + pe[:, None, :]).astype(o_ref.dtype)


def make_pe_buffer(d_model, max_len=512, dtype=jnp.float32):
    """Sinusoidal table identical to the PyTorch __init__, kept 2-D [max_len, d_model].

    (The PyTorch buffer is [max_len, 1, d_model]; the size-1 axis exists only
    for broadcasting, which we do inside the kernel instead.)
    """
    assert d_model % 2 == 0, "d_model must be even (same latent constraint as the PyTorch module)"
    position = jnp.arange(max_len, dtype=jnp.float32)[:, None]              # [max_len, 1]
    div_term = jnp.exp(
        jnp.arange(0, d_model, 2, dtype=jnp.float32) * (-math.log(10000.0) / d_model)
    )                                                                        # [d_model//2]
    angles = position * div_term                                             # [max_len, d_model//2]
    pe = jnp.zeros((max_len, d_model), dtype=jnp.float32)
    pe = pe.at[:, 0::2].set(jnp.sin(angles))
    pe = pe.at[:, 1::2].set(jnp.cos(angles))
    return pe.astype(dtype)


def _pick_tile_s(seq_len, batch, d_model, itemsize, target_block_bytes=4 << 20):
    """Largest multiple-of-8 row count whose x-block stays under target_block_bytes.

    With double-buffered x-in, out, and pe blocks this keeps total VMEM usage
    around ~20 MiB, comfortably inside the scoped limit on v5e/v6e/v7x.
    """
    bytes_per_row = max(1, batch * d_model * itemsize)
    tile = (target_block_bytes // bytes_per_row) // 8 * 8
    tile = max(8, int(tile))
    if tile >= seq_len:
        return seq_len  # full extent: always a legal block shape
    return tile


def positional_encoding_forward(x, pe, *, tile_s=None, donate_x=False):
    """x: [seq_len, batch, d_model]; pe: [max_len, d_model] (2-D table)."""
    assert x.ndim == 3 and pe.ndim == 2
    seq_len, batch, d_model = x.shape
    assert pe.shape[0] >= seq_len and pe.shape[1] == d_model

    # Static slice + dtype reconciliation in plain JAX glue (avoids an f32
    # promotion inside the kernel when x is bf16, halves pe HBM traffic then).
    pe_slice = pe[:seq_len].astype(x.dtype)

    if tile_s is None:
        tile_s = _pick_tile_s(seq_len, batch, d_model, jnp.dtype(x.dtype).itemsize)
    tile_s = min(int(tile_s), seq_len)
    grid = (pl.cdiv(seq_len, tile_s),)

    extra = {}
    if donate_x:
        # Reuse x's HBM buffer for the output when the caller no longer needs x.
        extra["input_output_aliases"] = {0: 0}

    return pl.pallas_call(
        _add_pe_kernel,
        out_shape=jax.ShapeDtypeStruct(x.shape, x.dtype),
        grid=grid,
        in_specs=[
            pl.BlockSpec((tile_s, batch, d_model), lambda i: (i, 0, 0)),
            pl.BlockSpec((tile_s, d_model), lambda i: (i, 0)),
        ],
        out_specs=pl.BlockSpec((tile_s, batch, d_model), lambda i: (i, 0, 0)),
        compiler_params=pltpu.CompilerParams(
            dimension_semantics=("parallel",),      # grid steps are independent
            vmem_limit_bytes=48 * 1024 * 1024,      # explicit; tiles sized to fit v7x too
        ),
        **extra,
    )(x, pe_slice)


if __name__ == "__main__":
    max_len = 512
    seq_len, batch, d_model = 8, 2, 32

    key = jax.random.PRNGKey(0)
    x = jax.random.normal(key, (seq_len, batch, d_model), dtype=jnp.float32)
    pe = make_pe_buffer(d_model, max_len=max_len, dtype=jnp.float32)

    # Case 1: toy module shape (single grid step, full-extent blocks).
    out = jax.block_until_ready(positional_encoding_forward(x, pe))
    ref = x + pe[:seq_len][:, None, :]
    assert out.shape == x.shape and out.dtype == x.dtype
    assert jnp.allclose(out, ref, atol=1e-6, rtol=1e-6)

    # Case 2: exercise the seq grid / DMA pipelining (3 tiles of 8 rows).
    seq_len2 = 24
    x2 = jax.random.normal(jax.random.PRNGKey(1), (seq_len2, batch, d_model), dtype=jnp.float32)
    out2 = jax.block_until_ready(positional_encoding_forward(x2, pe, tile_s=8))
    ref2 = x2 + pe[:seq_len2][:, None, :]
    assert jnp.allclose(out2, ref2, atol=1e-6, rtol=1e-6)

    # Case 3: bf16 activations (pe is cast in the wrapper; no promotion mismatch).
    x3 = x2.astype(jnp.bfloat16)
    out3 = jax.block_until_ready(positional_encoding_forward(x3, pe, tile_s=8))
    ref3 = (x3 + pe[:seq_len2].astype(jnp.bfloat16)[:, None, :]).astype(jnp.bfloat16)
    assert out3.dtype == jnp.bfloat16
    assert jnp.allclose(out3.astype(jnp.float32), ref3.astype(jnp.float32), atol=1e-2, rtol=1e-2)

    print("KERNEL_OK")
</pallas_src>

<mosaic_0001>
module attributes {stable_mosaic.version = 11 : i64} {
  func.func @_add_pe_kernel(%arg0: i32, %arg1: memref<8x2x32xf32, #tpu.memory_space<vmem>>, %arg2: memref<8x32xf32, #tpu.memory_space<vmem>>, %arg3: memref<8x2x32xf32, #tpu.memory_space<vmem>>) attributes {dimension_semantics = [#tpu.dimension_semantics<parallel>], iteration_bounds = array<i64: 1>, scalar_prefetch = 0 : i64, scratch_operands = 0 : i64, tpu.core_type = #tpu.core_type<tc>, window_params = [{transform_indices = @transform_0, window_bounds = array<i64: 8, 2, 32>}, {transform_indices = @transform_1, window_bounds = array<i64: 8, 32>}, {transform_indices = @transform_2, window_bounds = array<i64: 8, 2, 32>}]} {
    %c0 = arith.constant 0 : index
    %c0_0 = arith.constant 0 : index
    %c0_1 = arith.constant 0 : index
    %0 = vector.load %arg1[%c0, %c0_0, %c0_1] : memref<8x2x32xf32, #tpu.memory_space<vmem>>, vector<8x2x32xf32>
    %c0_2 = arith.constant 0 : index
    %c0_3 = arith.constant 0 : index
    %1 = vector.load %arg2[%c0_2, %c0_3] : memref<8x32xf32, #tpu.memory_space<vmem>>, vector<8x32xf32>
    %2 = vector.shape_cast %1 : vector<8x32xf32> to vector<8x1x32xf32>
    %3 = vector.broadcast %2 : vector<8x1x32xf32> to vector<8x2x32xf32>
    %4 = arith.addf %0, %3 : vector<8x2x32xf32>
    %c0_4 = arith.constant 0 : index
    %c0_5 = arith.constant 0 : index
    %c0_6 = arith.constant 0 : index
    %5 = vector.load %arg3[%c0_4, %c0_5, %c0_6] : memref<8x2x32xf32, #tpu.memory_space<vmem>>, vector<8x2x32xf32>
    tpu.vector_store %arg3[%c0_4, %c0_5, %c0_6], %4 {strides = array<i32>} : memref<8x2x32xf32, #tpu.memory_space<vmem>>, vector<8x2x32xf32>,
    return
  }
  func.func @transform_0(%arg0: i32) -> (i32, i32, i32) {
    %c0_i32 = arith.constant 0 : i32
    %c0_i32_0 = arith.constant 0 : i32
    %c0_i32_1 = arith.constant 0 : i32
    return %arg0, %c0_i32, %c0_i32_0 : i32, i32, i32
  }
  func.func @transform_1(%arg0: i32) -> (i32, i32) {
    %c0_i32 = arith.constant 0 : i32
    %c0_i32_0 = arith.constant 0 : i32
    return %arg0, %c0_i32 : i32, i32
  }
  func.func @transform_2(%arg0: i32) -> (i32, i32, i32) {
    %c0_i32 = arith.constant 0 : i32
    %c0_i32_0 = arith.constant 0 : i32
    %c0_i32_1 = arith.constant 0 : i32
    return %arg0, %c0_i32, %c0_i32_0 : i32, i32, i32
  }
}

</mosaic_0001>

<llo_original>
// kernel: tpu_custom_call.1
$region0: #{tpu_custom_call.1}
  #allocation0 [shape = 'u32[]', space=smem, size = 0x4, offset = 0x4, fixed_abs, tag = 'smem constant byte address 0x4 - core index']
  #allocation1 [shape = 'u32[72,128]{1,0:T(1,128)}', space=vmem, size = 0x9000, scoped, tag = 'internal scratch']
  %s0 = inlined_call_operand.hbm [shape: f32[8,2,32], index: 0, kind: input, shape index: {}]
  %s1 = inlined_call_operand.hbm [shape: f32[8,32], index: 1, kind: input, shape index: {}]
  %s2 = inlined_call_operand.hbm [shape: f32[8,2,32], index: 2, kind: output, shape index: {}]
  %s3 = sld [smem:[#allocation0]]
  $region26: #{tpu_custom_call.1} parent=0
    _
  %s5 = ssub.s32 1, %s3
  %s6 = scalar_select 0, %s5, %s3
  $region1: #{tpu_custom_call.1} parent=0
    #allocation2 [shape = 'u8[8192]{0}', space=vmem, size = 0x2000, scoped, tag = 'input window, operand 0, single buffered']
    #allocation3 [shape = 's32[1]{0}', space=sflag, size = 0x4, scoped, tag = 'scoped memory for tpu_custom_call.1']
    #allocation4 [shape = 's32[1]{0}', space=sflag, size = 0x4, scoped, tag = 'scoped memory for tpu_custom_call.1']
    #allocation5 [shape = 'u8[4096]{0}', space=vmem, size = 0x1000, scoped, tag = 'input window, operand 1, single buffered']
    #allocation6 [shape = 's32[1]{0}', space=sflag, size = 0x4, scoped, tag = 'scoped memory for tpu_custom_call.1']
    #allocation7 [shape = 'u8[8192]{0}', space=vmem, size = 0x2000, scoped, tag = 'output window, operand 0, single buffered']
    %7 = vsyncpa [#allocation3], 0
    %8 = vsyncpa [#allocation6], 0
    %9 = vsyncpa [#allocation4], 0
    // Predicated region
    $region2: #{tpu_custom_call.1} parent=1 // pred_check
      _
    $region3: #{tpu_custom_call.1} parent=1 // pred_check_branch
      %11 = sbr.rel (0) target = $region5
    $region4: #{tpu_custom_call.1} parent=1 // pred_region
      %13 = vsyncadd [#allocation3], 0
      %s14 = sshll.u32 %s0, 4
      %s15 = int_to_ptr.hbm [resolvable:$true] %s14
      %s16 = sshll.u32 [#allocation2], 4
      %s17 = int_to_ptr.vmem [resolvable:$true] %s16
      %22 = dma.hbm_to_vmem [thread:$0]  %s15, 256, %s17, [#allocation3], 32, 32, 2
    $region5: #{tpu_custom_call.1} parent=1 // pred_fallthru
      _
    // Predicated region
    $region6: #{tpu_custom_call.1} parent=1 // pred_check
      _
    $region7: #{tpu_custom_call.1} parent=1 // pred_check_branch
      %24 = sbr.rel (0) target = $region9
    $region8: #{tpu_custom_call.1} parent=1 // pred_region
      %26 = vsyncadd [#allocation6], 0
      %s28 = sshll.u32 %s1, 4
      %s29 = int_to_ptr.hbm [resolvable:$true] %s28
      %s30 = sshll.u32 [#allocation5], 4
      %s31 = int_to_ptr.vmem [resolvable:$true] %s30
      %33 = dma.hbm_to_vmem [thread:$0]  %s29, 128, %s31, [#allocation6]
    $region9: #{tpu_custom_call.1} parent=1 // pred_fallthru
      _
    // Predicated region
    $region10: #{tpu_custom_call.1} parent=1 // pred_check
      _
    $region11: #{tpu_custom_call.1} parent=1 // pred_check_branch
      %35 = sbr.rel (0) target = $region13
    $region12: #{tpu_custom_call.1} parent=1 // pred_region
      %37 = dma.done [#allocation3], 256
    $region13: #{tpu_custom_call.1} parent=1 // pred_fallthru
      _
    // Predicated region
    $region14: #{tpu_custom_call.1} parent=1 // pred_check
      _
    $region15: #{tpu_custom_call.1} parent=1 // pred_check_branch
      %39 = sbr.rel (0) target = $region17
    $region16: #{tpu_custom_call.1} parent=1 // pred_region
      %41 = dma.done [#allocation6], 128
    $region17: #{tpu_custom_call.1} parent=1 // pred_fallthru
      _
    %v42 = vld [vmem:[#allocation2] sm:$0x3]
    %v43 = vld [vmem:[#allocation2 + $0x2] sm:$0x3]
    %v44 = vld [vmem:[#allocation2 + $0x4] sm:$0x3]
    %v45 = vld [vmem:[#allocation2 + $0x6] sm:$0x3]
    %v46 = vld [vmem:[#allocation2 + $0x8] sm:$0x3]
    %v47 = vld [vmem:[#allocation2 + $0xa] sm:$0x3]
    %v48 = vld [vmem:[#allocation2 + $0xc] sm:$0x3]
    %v49 = vld [vmem:[#allocation2 + $0xe] sm:$0x3]
    %v50 = vld [vmem:[#allocation5] sm:$0xff]
    %v52 = vrot.slane %v50, 1
    %v53 = vrot.slane %v50, 2
    %v54 = vrot.slane %v50, 3
    %v55 = vrot.slane %v50, 4
    %v56 = vrot.slane %v50, 5
    %v57 = vrot.slane %v50, 6
    %v58 = vrot.slane %v50, 7
    %v59 = vperm.slane %v50, 0
    %v60 = vperm.slane %v52, 0
    %v61 = vperm.slane %v53, 0
    %v62 = vperm.slane %v54, 0
    %v63 = vperm.slane %v55, 0
    %v64 = vperm.slane %v56, 0
    %v65 = vperm.slane %v57, 0
    %v66 = vperm.slane %v58, 0
    %v75 = vadd.f32 %v42, %v59
    %v76 = vadd.f32 %v43, %v60
    %v77 = vadd.f32 %v44, %v61
    %v78 = vadd.f32 %v45, %v62
    %v79 = vadd.f32 %v46, %v63
    %v80 = vadd.f32 %v47, %v64
    %v81 = vadd.f32 %v48, %v65
    %v82 = vadd.f32 %v49, %v66
    %vm83 = vcmask 254976
    %84 = vst.msk [vmem:[#allocation7] sm:$0x3] %vm83, %v75
    %85 = vst.msk [vmem:[#allocation7 + $0x2] sm:$0x3] %vm83, %v76
    %86 = vst.msk [vmem:[#allocation7 + $0x4] sm:$0x3] %vm83, %v77
    %87 = vst.msk [vmem:[#allocation7 + $0x6] sm:$0x3] %vm83, %v78
    %88 = vst.msk [vmem:[#allocation7 + $0x8] sm:$0x3] %vm83, %v79
    %89 = vst.msk [vmem:[#allocation7 + $0xa] sm:$0x3] %vm83, %v80
    %90 = vst.msk [vmem:[#allocation7 + $0xc] sm:$0x3] %vm83, %v81
    %91 = vst.msk [vmem:[#allocation7 + $0xe] sm:$0x3] %vm83, %v82
    // Predicated region
    $region18: #{tpu_custom_call.1} parent=1 // pred_check
      _
    $region19: #{tpu_custom_call.1} parent=1 // pred_check_branch
      %93 = sbr.rel (0) target = $region21
    $region20: #{tpu_custom_call.1} parent=1 // pred_region
      %95 = vsyncadd [#allocation4], 0
      %s96 = sshll.u32 [#allocation7], 4
      %s97 = int_to_ptr.vmem [resolvable:$true] %s96
      %s98 = sshll.u32 %s2, 4
      %s99 = int_to_ptr.hbm [resolvable:$true] %s98
      %104 = dma.vmem_to_hbm [thread:$0]  %s97, 256, %s99, [#allocation4], 32, 32, 2
    $region21: #{tpu_custom_call.1} parent=1 // pred_fallthru
      _
    // Predicated region
    $region22: #{tpu_custom_call.1} parent=1 // pred_check
      _
    $region23: #{tpu_custom_call.1} parent=1 // pred_check_branch
      %106 = sbr.rel (0) target = $region25
    $region24: #{tpu_custom_call.1} parent=1 // pred_region
      %108 = dma.done [#allocation4], 256
    $region25: #{tpu_custom_call.1} parent=1 // pred_fallthru
      _
    %109 = vsyncpa [#allocation3], 1
    %110 = vsyncpa [#allocation6], 1
    %111 = vsyncpa [#allocation4], 1

</llo_original>
